<compile_context>
chip_gen: v5e
topology: v5e:2x2
jax: 0.10.0
libtpu: 0.0.40
codegen_flags: <defaults>
</compile_context>

<pallas_src>
import functools

import jax
import jax.numpy as jnp
from jax.experimental import pallas as pl
from jax.experimental.pallas import tpu as pltpu

_LANE = 128
_SUBLANE = 8
_NEG_BIG = -1e30   # bias for padded class lanes -> exp() == 0 exactly (kept in f32)


def _round_up(x, m):
    return ((x + m - 1) // m) * m


def _vmem_limit_bytes():
    """Generation-aware scoped-VMEM limit (safe fallback off-TPU / unknown)."""
    try:
        kind = jax.devices()[0].device_kind.lower()
    except Exception:
        kind = ""
    if "v7" in kind:
        return 48 * 1024 * 1024    # v7x: 64 MiB physical per TC -> leave headroom
    if "v5" in kind or "v6" in kind:
        return 96 * 1024 * 1024    # v5e/v6e: 128 MiB physical VMEM
    return 64 * 1024 * 1024


def _vmem_need_bytes(tb, tk, c_pad, num_classes, w_bytes):
    x_bufs = 2 * tb * tk * 4                              # f32 x, double-buffered
    w_bufs = 2 * tk * c_pad * w_bytes                     # weight (conservatively x2)
    b_bufs = 2 * c_pad * 4
    out_bufs = 2 * tb * _round_up(num_classes, _LANE) * 4
    acc = tb * c_pad * 4                                  # f32 accumulator scratch
    return x_bufs + w_bufs + b_bufs + out_bufs + acc


def _choose_tiles(B, F, c_pad, num_classes, w_bytes, block_b, budget):
    """Pick (tb, tk): batch tile and feature (K) tile that fit the VMEM budget."""
    tb = min(block_b, _round_up(B, _SUBLANE))
    # Give the "parallel" batch axis >= 2 grid steps (2 TensorCores on v7x) as
    # long as each step keeps >= ~256 rows to amortize the per-step overhead.
    if pl.cdiv(B, tb) < 2 and B >= 512:
        tb = min(tb, _round_up(pl.cdiv(B, 2), _SUBLANE))

    while True:
        if _vmem_need_bytes(tb, F, c_pad, num_classes, w_bytes) <= budget:
            return tb, F           # F un-tiled: weight stays VMEM-resident
        if F % _LANE == 0:
            best = 0
            tk = _LANE
            while tk < F:
                if F % tk == 0 and _vmem_need_bytes(
                        tb, tk, c_pad, num_classes, w_bytes) <= budget:
                    best = tk
                tk += _LANE
            if best:
                return tb, best    # K-tiled path
        if tb > _SUBLANE:
            tb = max(_SUBLANE, _round_up(tb // 2, _SUBLANE))
        else:
            # TODO(synk): F too large and not divisible by 128 -> no clean K tile;
            # fall back to un-tiled F and rely on the raised VMEM limit.
            return tb, F


def _linear_softmax_kernel(x_ref, w_ref, b_ref, o_ref, acc_ref, *, cast_to_bf16):
    # x_ref:   (tb, tk)      f32        w_ref: (tk, c_pad)  bf16/f32
    # b_ref:   (1, c_pad)    f32        o_ref: (tb, num_classes) f32
    # acc_ref: (tb, c_pad)   f32 scratch (persists across the K grid axis)
    k = pl.program_id(1)

    @pl.when(k == 0)
    def _():
        acc_ref[...] = jnp.zeros_like(acc_ref)

    x = x_ref[...]
    if cast_to_bf16:
        x = x.astype(jnp.bfloat16)   # cast in VMEM: the HBM x stream stays f32
    acc_ref[...] += jnp.dot(x, w_ref[...], preferred_element_type=jnp.float32)

    @pl.when(k == pl.num_programs(1) - 1)
    def _():
        logits = acc_ref[...] + b_ref[...]   # padded lanes carry -1e30 -> exp == 0
        m = jnp.max(logits, axis=-1, keepdims=True)
        e = jnp.exp(logits - m)
        denom = jnp.sum(e, axis=-1, keepdims=True)
        probs = e / denom                    # exact divide: rows sum to 1
        # Store only the real classes: tiny, contiguous writeback (no padded buffer).
        o_ref[...] = probs[:, : o_ref.shape[-1]].astype(o_ref.dtype)


class LinearClassifierPallas:
    """Pallas TPU forward for: softmax(flatten(x) @ W^T + b, axis=1)."""

    def __init__(self, weight, bias, *, use_bf16=True, block_b=1024):
        # weight: (num_classes, F) as in nn.Linear.weight; bias: (num_classes,)
        num_classes, feat = weight.shape
        self.num_classes = int(num_classes)
        self.F = int(feat)
        self.use_bf16 = bool(use_bf16)
        self.block_b = int(block_b)

        # Class (lane) padding: multiple of 128; multiple of 256 once >128 classes
        # so an MXU pass on v6e/v7x (256-wide) is not half-wasted.
        lane_pad = _LANE if num_classes <= _LANE else 2 * _LANE
        self.c_pad = _round_up(self.num_classes, lane_pad)

        # Precompute padded / cast parameters once (not per forward call).
        w_t = jnp.asarray(weight, jnp.float32).T                          # (F, C)
        w_p = jnp.pad(w_t, ((0, 0), (0, self.c_pad - self.num_classes)))  # zero cols
        self.w_dtype = jnp.bfloat16 if self.use_bf16 else jnp.float32
        self.w_p = w_p.astype(self.w_dtype)

        b_p = jnp.full((1, self.c_pad), _NEG_BIG, dtype=jnp.float32)      # f32, not bf16
        self.b_p = b_p.at[0, : self.num_classes].set(jnp.asarray(bias, jnp.float32))

    def __call__(self, x):
        B = x.shape[0]
        x2d = x.reshape(B, -1)                      # same flatten order as torch .view(B,-1)
        assert x2d.shape[1] == self.F
        x2d = x2d.astype(jnp.float32)               # no-op for f32 inputs

        vmem_limit = _vmem_limit_bytes()
        budget = int(vmem_limit * 0.85)
        w_bytes = jnp.dtype(self.w_dtype).itemsize
        tb, tk = _choose_tiles(B, self.F, self.c_pad, self.num_classes,
                               w_bytes, self.block_b, budget)
        nb = pl.cdiv(B, tb)                          # ragged last batch block is OK
        nk = self.F // tk

        kernel = functools.partial(_linear_softmax_kernel, cast_to_bf16=self.use_bf16)

        cost = pl.CostEstimate(
            flops=2 * B * self.F * self.c_pad,
            transcendentals=B * self.c_pad,
            bytes_accessed=(B * self.F * 4 + self.F * self.c_pad * w_bytes
                            + B * self.num_classes * 4 + self.c_pad * 4),
        )

        c_pad = self.c_pad
        out = pl.pallas_call(
            kernel,
            out_shape=jax.ShapeDtypeStruct((B, self.num_classes), jnp.float32),
            grid=(nb, nk),
            in_specs=[
                pl.BlockSpec((tb, tk), lambda i, k: (i, k)),      # x: streamed f32
                pl.BlockSpec((tk, c_pad), lambda i, k: (k, 0)),   # W: resident if nk==1
                pl.BlockSpec((1, c_pad), lambda i, k: (0, 0)),    # bias: resident
            ],
            out_specs=pl.BlockSpec((tb, self.num_classes), lambda i, k: (i, 0)),
            scratch_shapes=[pltpu.VMEM((tb, c_pad), jnp.float32)],
            compiler_params=pltpu.CompilerParams(
                dimension_semantics=("parallel", "arbitrary"),
                vmem_limit_bytes=vmem_limit,
            ),
            cost_estimate=cost,
        )(x2d, self.w_p, self.b_p)
        return out


if __name__ == "__main__":
    # Small shapes consistent with the module: input_shape=(4, 16, 16), 10 classes.
    B, C, H, W = 2, 4, 16, 16
    num_classes = 10
    F = C * H * W

    key = jax.random.PRNGKey(0)
    kx, kw, kb = jax.random.split(key, 3)

    x = jax.random.normal(kx, (B, C, H, W), dtype=jnp.float32)

    # nn.Linear-style init: U(-1/sqrt(F), 1/sqrt(F)); weight layout (num_classes, F).
    bound = 1.0 / (F ** 0.5)
    w = jax.random.uniform(kw, (num_classes, F), dtype=jnp.float32,
                           minval=-bound, maxval=bound)
    b = jax.random.uniform(kb, (num_classes,), dtype=jnp.float32,
                           minval=-bound, maxval=bound)

    x2d = x.reshape(B, -1)

    # --- default path: bf16 matmul (cast in-kernel), f32 accumulate + softmax ---
    model = LinearClassifierPallas(w, b, use_bf16=True)
    out = jax.block_until_ready(model(x))

    logits_bf = jnp.dot(x2d.astype(jnp.bfloat16), w.T.astype(jnp.bfloat16),
                        preferred_element_type=jnp.float32) + b
    ref_bf = jax.nn.softmax(logits_bf, axis=1)

    assert out.shape == (B, num_classes)
    assert out.dtype == jnp.float32
    assert jnp.allclose(out, ref_bf, atol=2e-3, rtol=2e-3)
    assert jnp.allclose(jnp.sum(out, axis=1), 1.0, atol=1e-4)

    # --- strict f32 parity path (matches the PyTorch module's precision) ---
    model_f32 = LinearClassifierPallas(w, b, use_bf16=False)
    out_f32 = jax.block_until_ready(model_f32(x))
    ref_f32 = jax.nn.softmax(jnp.dot(x2d, w.T) + b, axis=1)

    assert jnp.allclose(out_f32, ref_f32, atol=1e-4, rtol=1e-4)
    assert jnp.allclose(jnp.sum(out_f32, axis=1), 1.0, atol=1e-4)

    print("KERNEL_OK")
</pallas_src>

<mosaic_0001>
module attributes {stable_mosaic.version = 11 : i64} {
  func.func @_linear_softmax_kernel(%arg0: i32, %arg1: i32, %arg2: memref<8x1024xf32, #tpu.memory_space<vmem>>, %arg3: memref<1024x128xbf16, #tpu.memory_space<vmem>>, %arg4: memref<1x128xf32, #tpu.memory_space<vmem>>, %arg5: memref<8x10xf32, #tpu.memory_space<vmem>>, %arg6: memref<8x128xf32, #tpu.memory_space<vmem>>) attributes {dimension_semantics = [#tpu.dimension_semantics<parallel>, #tpu.dimension_semantics<arbitrary>], iteration_bounds = array<i64: 1, 1>, scalar_prefetch = 0 : i64, scratch_operands = 1 : i64, tpu.core_type = #tpu.core_type<tc>, window_params = [{transform_indices = @transform_0, window_bounds = array<i64: 8, 1024>}, {transform_indices = @transform_1, window_bounds = array<i64: 1024, 128>}, {pipeline_mode = #tpu.pipeline_mode<synchronous>, transform_indices = @transform_2, window_bounds = array<i64: 1, 128>}, {transform_indices = @transform_3, window_bounds = array<i64: 8, 10>}]} {
    %c0_i32 = arith.constant 0 : i32
    %0 = arith.cmpi eq, %arg1, %c0_i32 : i32
    %1 = arith.extui %0 : i1 to i32
    %c0_i32_0 = arith.constant 0 : i32
    %2 = arith.cmpi ne, %1, %c0_i32_0 : i32
    scf.if %2 {
      %cst_10 = arith.constant 0.000000e+00 : f32
      %13 = vector.broadcast %cst_10 : f32 to vector<8x128xf32>
      %c0_11 = arith.constant 0 : index
      %c0_12 = arith.constant 0 : index
      %14 = vector.load %arg6[%c0_11, %c0_12] : memref<8x128xf32, #tpu.memory_space<vmem>>, vector<8x128xf32>
      tpu.vector_store %arg6[%c0_11, %c0_12], %13 {strides = array<i32>} : memref<8x128xf32, #tpu.memory_space<vmem>>, vector<8x128xf32>,
    } else {
    }
    %c0 = arith.constant 0 : index
    %c0_1 = arith.constant 0 : index
    %3 = vector.load %arg2[%c0, %c0_1] : memref<8x1024xf32, #tpu.memory_space<vmem>>, vector<8x1024xf32>
    %4 = arith.truncf %3 : vector<8x1024xf32> to vector<8x1024xbf16>
    %c0_2 = arith.constant 0 : index
    %c0_3 = arith.constant 0 : index
    %5 = vector.load %arg6[%c0_2, %c0_3] : memref<8x128xf32, #tpu.memory_space<vmem>>, vector<8x128xf32>
    %c0_4 = arith.constant 0 : index
    %c0_5 = arith.constant 0 : index
    %6 = vector.load %arg3[%c0_4, %c0_5] : memref<1024x128xbf16, #tpu.memory_space<vmem>>, vector<1024x128xbf16>
    %cst = arith.constant dense<0.000000e+00> : vector<8x128xf32>
    %7 = tpu.matmul %4, %6, %cst {dimension_numbers = #tpu.dot_dimension_numbers<[1], [0], [0], [1], [0, 0, 1, 1], [], []>} : vector<8x1024xbf16>, vector<1024x128xbf16>, vector<8x128xf32> -> vector<8x128xf32>
    %8 = arith.addf %5, %7 : vector<8x128xf32>
    %c0_6 = arith.constant 0 : index
    %c0_7 = arith.constant 0 : index
    %9 = vector.load %arg6[%c0_6, %c0_7] : memref<8x128xf32, #tpu.memory_space<vmem>>, vector<8x128xf32>
    tpu.vector_store %arg6[%c0_6, %c0_7], %8 {strides = array<i32>} : memref<8x128xf32, #tpu.memory_space<vmem>>, vector<8x128xf32>,
    %c0_i32_8 = arith.constant 0 : i32
    %10 = arith.cmpi eq, %arg1, %c0_i32_8 : i32
    %11 = arith.extui %10 : i1 to i32
    %c0_i32_9 = arith.constant 0 : i32
    %12 = arith.cmpi ne, %11, %c0_i32_9 : i32
    scf.if %12 {
      %c0_10 = arith.constant 0 : index
      %c0_11 = arith.constant 0 : index
      %13 = vector.load %arg6[%c0_10, %c0_11] : memref<8x128xf32, #tpu.memory_space<vmem>>, vector<8x128xf32>
      %c0_12 = arith.constant 0 : index
      %c0_13 = arith.constant 0 : index
      %14 = vector.load %arg4[%c0_12, %c0_13] : memref<1x128xf32, #tpu.memory_space<vmem>>, vector<1x128xf32>
      %15 = vector.broadcast %14 : vector<1x128xf32> to vector<8x128xf32>
      %16 = arith.addf %13, %15 : vector<8x128xf32>
      %cst_14 = arith.constant dense<0xFF800000> : vector<8xf32>
      %17 = vector.multi_reduction <maximumf>, %16, %cst_14 [1] : vector<8x128xf32> to vector<8xf32>
      %18 = vector.shape_cast %17 : vector<8xf32> to vector<8x1xf32>
      %19 = vector.broadcast %18 : vector<8x1xf32> to vector<8x128xf32>
      %20 = arith.subf %16, %19 : vector<8x128xf32>
      %21 = math.exp %20 : vector<8x128xf32>
      %cst_15 = arith.constant dense<0.000000e+00> : vector<8xf32>
      %22 = vector.multi_reduction <add>, %21, %cst_15 [1] : vector<8x128xf32> to vector<8xf32>
      %23 = vector.shape_cast %22 : vector<8xf32> to vector<8x1xf32>
      %24 = vector.broadcast %23 : vector<8x1xf32> to vector<8x128xf32>
      %25 = arith.divf %21, %24 : vector<8x128xf32>
      %26 = vector.extract_strided_slice %25 {offsets = [0, 0], sizes = [8, 10], strides = [1, 1]} : vector<8x128xf32> to vector<8x10xf32>
      %c0_16 = arith.constant 0 : index
      %c0_17 = arith.constant 0 : index
      %27 = vector.load %arg5[%c0_16, %c0_17] : memref<8x10xf32, #tpu.memory_space<vmem>>, vector<8x10xf32>
      tpu.vector_store %arg5[%c0_16, %c0_17], %26 {strides = array<i32>} : memref<8x10xf32, #tpu.memory_space<vmem>>, vector<8x10xf32>,
    } else {
    }
    return
  }
  func.func @transform_0(%arg0: i32, %arg1: i32) -> (i32, i32) {
    %c0_i32 = arith.constant 0 : i32
    return %arg0, %arg1 : i32, i32
  }
  func.func @transform_1(%arg0: i32, %arg1: i32) -> (i32, i32) {
    %c0_i32 = arith.constant 0 : i32
    %c0_i32_0 = arith.constant 0 : i32
    return %arg1, %c0_i32 : i32, i32
  }
  func.func @transform_2(%arg0: i32, %arg1: i32) -> (i32, i32) {
    %c0_i32 = arith.constant 0 : i32
    %c0_i32_0 = arith.constant 0 : i32
    %c0_i32_1 = arith.constant 0 : i32
    return %c0_i32, %c0_i32_0 : i32, i32
  }
  func.func @transform_3(%arg0: i32, %arg1: i32) -> (i32, i32) {
    %c0_i32 = arith.constant 0 : i32
    %c0_i32_0 = arith.constant 0 : i32
    return %arg0, %c0_i32 : i32, i32
  }
}

</mosaic_0001>

<llo_original>
// kernel: tpu_custom_call.1
$region0: #{tpu_custom_call.1}
  #allocation0 [shape = 'u32[]', space=smem, size = 0x4, offset = 0x4, fixed_abs, tag = 'smem constant byte address 0x4 - core index']
  #allocation1 [shape = 'u32[72,128]{1,0:T(1,128)}', space=vmem, size = 0x9000, scoped, tag = 'internal scratch']
  #allocation2 [shape = 'f32[8,128]{1,0:T(8,128)}', space=vmem, size = 0x1000, scoped, tag = 'scratch operand']
  %s0 = inlined_call_operand.hbm [shape: f32[2,1024], index: 0, kind: input, shape index: {}]
  %s1 = inlined_call_operand.hbm [shape: bf16[1024,128], index: 1, kind: input, shape index: {}]
  %s2 = inlined_call_operand.vmem [shape: f32[1,128], index: 2, kind: input, shape index: {}]
  %s3 = inlined_call_operand.hbm [shape: f32[2,10], index: 3, kind: output, shape index: {}]
  %s4 = sld [smem:[#allocation0]]
  $region38: #{tpu_custom_call.1} parent=0
    _
  %s6 = ssub.s32 1, %s4
  %s7 = scalar_select 0, %s6, %s4
  $region1: #{tpu_custom_call.1} parent=0
    #allocation3 [shape = 'u8[32768]{0}', space=vmem, size = 0x8000, scoped, tag = 'input window, operand 0, single buffered']
    #allocation4 [shape = 's32[1]{0}', space=sflag, size = 0x4, scoped, tag = 'scoped memory for tpu_custom_call.1']
    #allocation5 [shape = 's32[1]{0}', space=sflag, size = 0x4, scoped, tag = 'scoped memory for tpu_custom_call.1']
    #allocation6 [shape = 'u8[262144]{0}', space=vmem, size = 0x40000, scoped, tag = 'input window, operand 1, single buffered']
    #allocation7 [shape = 's32[1]{0}', space=sflag, size = 0x4, scoped, tag = 'scoped memory for tpu_custom_call.1']
    #allocation8 [shape = 'u8[4096]{0}', space=vmem, size = 0x1000, scoped, tag = 'output window, operand 0, single buffered']
    %8 = vsyncpa [#allocation4], 0
    %9 = vsyncpa [#allocation7], 0
    %10 = vsyncpa [#allocation5], 0
    // Predicated region
    $region2: #{tpu_custom_call.1} parent=1 // pred_check
      _
    $region3: #{tpu_custom_call.1} parent=1 // pred_check_branch
      %12 = sbr.rel (0) target = $region5
    $region4: #{tpu_custom_call.1} parent=1 // pred_region
      %14 = vsyncadd [#allocation4], 768
      %s15 = sshll.u32 %s0, 4
      %s16 = int_to_ptr.hbm [resolvable:$true] %s15
      %s17 = sshll.u32 [#allocation3], 4
      %s18 = int_to_ptr.vmem [resolvable:$true] %s17
      %23 = dma.hbm_to_vmem [thread:$0]  %s16, 256, %s18, [#allocation4], 256, 256, 16
    $region5: #{tpu_custom_call.1} parent=1 // pred_fallthru
      _
    // Predicated region
    $region6: #{tpu_custom_call.1} parent=1 // pred_check
      _
    $region7: #{tpu_custom_call.1} parent=1 // pred_check_branch
      %25 = sbr.rel (0) target = $region9
    $region8: #{tpu_custom_call.1} parent=1 // pred_region
      %27 = vsyncadd [#allocation7], 0
      %s28 = sshll.u32 %s1, 4
      %s29 = int_to_ptr.hbm [resolvable:$true] %s28
      %s30 = sshll.u32 [#allocation6], 4
      %s31 = int_to_ptr.vmem [resolvable:$true] %s30
      %36 = dma.hbm_to_vmem [thread:$0]  %s29, 8192, %s31, [#allocation7], 64, 64, 4
    $region9: #{tpu_custom_call.1} parent=1 // pred_fallthru
      _
    // Predicated region
    $region10: #{tpu_custom_call.1} parent=1 // pred_check
      _
    $region11: #{tpu_custom_call.1} parent=1 // pred_check_branch
      %38 = sbr.rel (0) target = $region13
    $region12: #{tpu_custom_call.1} parent=1 // pred_region
      _
    $region13: #{tpu_custom_call.1} parent=1 // pred_fallthru
      _
    // Predicated region
    $region14: #{tpu_custom_call.1} parent=1 // pred_check
      _
    $region15: #{tpu_custom_call.1} parent=1 // pred_check_branch
      %40 = sbr.rel (0) target = $region17
    $region16: #{tpu_custom_call.1} parent=1 // pred_region
      %42 = dma.done [#allocation4], 1024
    $region17: #{tpu_custom_call.1} parent=1 // pred_fallthru
      _
    // Predicated region
    $region18: #{tpu_custom_call.1} parent=1 // pred_check
      _
    $region19: #{tpu_custom_call.1} parent=1 // pred_check_branch
      %44 = sbr.rel (0) target = $region21
    $region20: #{tpu_custom_call.1} parent=1 // pred_region
      %46 = dma.done [#allocation7], 8192
    $region21: #{tpu_custom_call.1} parent=1 // pred_fallthru
      _
    %p47 = scmp.eq.s32.totalorder 0, 0
    // Predicated region
    $region22: #{tpu_custom_call.1} parent=1 // pred_check
      %p48 = pneg %p47
    $region23: #{tpu_custom_call.1} parent=1 // pred_check_branch
      %50 = sbr.rel (%p48) target = $region25
    $region24: #{tpu_custom_call.1} parent=1 // pred_region
      %51 = vst [vmem:[#allocation2] sm:$0xff] 0.0
    $region25: #{tpu_custom_call.1} parent=1 // pred_fallthru
      _
    %v52 = vld [vmem:[#allocation3] sm:$0xff]
    %v53 = vld [vmem:[#allocation3 + $0x8] sm:$0xff]
    %v54 = vld [vmem:[#allocation3 + $0x10] sm:$0xff]
    %v55 = vld [vmem:[#allocation3 + $0x18] sm:$0xff]
    %v56 = vld [vmem:[#allocation3 + $0x20] sm:$0xff]
    %v57 = vld [vmem:[#allocation3 + $0x28] sm:$0xff]
    %v58 = vld [vmem:[#allocation3 + $0x30] sm:$0xff]
    %v59 = vld [vmem:[#allocation3 + $0x38] sm:$0xff]
    %68 = vst [vmem:[#allocation1] ss:$4 sm:$0xff] %v52
    %s69 = scalar_lea.vmem [#allocation1], 1
    %70 = vst [vmem:[%s69] ss:$4 sm:$0xff] %v54
    %s71 = scalar_lea.vmem [#allocation1], 2
    %72 = vst [vmem:[%s71] ss:$4 sm:$0xff] %v56
    %s73 = scalar_lea.vmem [#allocation1], 3
    %74 = vst [vmem:[%s73] ss:$4 sm:$0xff] %v58
    %s75 = scalar_lea.vmem [#allocation1], 32
    %76 = vst [vmem:[%s75] ss:$4 sm:$0xff] %v53
    %s77 = scalar_lea.vmem [#allocation1], 33
    %78 = vst [vmem:[%s77] ss:$4 sm:$0xff] %v55
    %s79 = scalar_lea.vmem [#allocation1], 34
    %80 = vst [vmem:[%s79] ss:$4 sm:$0xff] %v57
    %s81 = scalar_lea.vmem [#allocation1], 35
    %82 = vst [vmem:[%s81] ss:$4 sm:$0xff] %v59
    %v83 = vld.sshfl [vmem:[#allocation1] sm:$0xff pattern:$0x73625140]
    %v84 = vld.sshfl [vmem:[#allocation1 + $0x8] sm:$0xff pattern:$0x73625140]
    %v85 = vld.sshfl [vmem:[#allocation1 + $0x10] sm:$0xff pattern:$0x73625140]
    %v86 = vld.sshfl [vmem:[#allocation1 + $0x18] sm:$0xff pattern:$0x73625140]
    %v87 = vld.sshfl [vmem:[#allocation1 + $0x20] sm:$0xff pattern:$0x73625140]
    %v88 = vld.sshfl [vmem:[#allocation1 + $0x28] sm:$0xff pattern:$0x73625140]
    %v89 = vld.sshfl [vmem:[#allocation1 + $0x30] sm:$0xff pattern:$0x73625140]
    %v90 = vld.sshfl [vmem:[#allocation1 + $0x38] sm:$0xff pattern:$0x73625140]
    %v99 = vpack.c.bf16 %v83, %v83
    %v100 = vpack.c.bf16 %v84, %v84
    %v101 = vpack.c.bf16 %v85, %v85
    %v102 = vpack.c.bf16 %v86, %v86
    %v103 = vpack.c.bf16 %v87, %v87
    %v104 = vpack.c.bf16 %v88, %v88
    %v105 = vpack.c.bf16 %v89, %v89
    %v106 = vpack.c.bf16 %v90, %v90
    %v107 = vld [vmem:[#allocation2] sm:$0xff]
    %v108 = vld [vmem:[#allocation6] sm:$0xf]
    %v109 = vld [vmem:[#allocation6 + $0x4] sm:$0xf]
    %v110 = vld [vmem:[#allocation6 + $0x8] sm:$0xf]
    %v111 = vld [vmem:[#allocation6 + $0xc] sm:$0xf]
    %v112 = vld [vmem:[#allocation6 + $0x10] sm:$0xf]
    %v113 = vld [vmem:[#allocation6 + $0x14] sm:$0xf]
    %v114 = vld [vmem:[#allocation6 + $0x18] sm:$0xf]
    %v115 = vld [vmem:[#allocation6 + $0x1c] sm:$0xf]
    %v116 = vld [vmem:[#allocation6 + $0x20] sm:$0xf]
    %v117 = vld [vmem:[#allocation6 + $0x24] sm:$0xf]
    %v118 = vld [vmem:[#allocation6 + $0x28] sm:$0xf]
    %v119 = vld [vmem:[#allocation6 + $0x2c] sm:$0xf]
    %v120 = vld [vmem:[#allocation6 + $0x30] sm:$0xf]
    %v121 = vld [vmem:[#allocation6 + $0x34] sm:$0xf]
    %v122 = vld [vmem:[#allocation6 + $0x38] sm:$0xf]
    %v123 = vld [vmem:[#allocation6 + $0x3c] sm:$0xf]
    %v124 = vld [vmem:[#allocation6 + $0x40] sm:$0xf]
    %v125 = vld [vmem:[#allocation6 + $0x44] sm:$0xf]
    %v126 = vld [vmem:[#allocation6 + $0x48] sm:$0xf]
    %v127 = vld [vmem:[#allocation6 + $0x4c] sm:$0xf]
    %v128 = vld [vmem:[#allocation6 + $0x50] sm:$0xf]
    %v129 = vld [vmem:[#allocation6 + $0x54] sm:$0xf]
    %v130 = vld [vmem:[#allocation6 + $0x58] sm:$0xf]
    %v131 = vld [vmem:[#allocation6 + $0x5c] sm:$0xf]
    %v132 = vld [vmem:[#allocation6 + $0x60] sm:$0xf]
    %v133 = vld [vmem:[#allocation6 + $0x64] sm:$0xf]
    %v134 = vld [vmem:[#allocation6 + $0x68] sm:$0xf]
    %v135 = vld [vmem:[#allocation6 + $0x6c] sm:$0xf]
    %v136 = vld [vmem:[#allocation6 + $0x70] sm:$0xf]
    %v137 = vld [vmem:[#allocation6 + $0x74] sm:$0xf]
    %v138 = vld [vmem:[#allocation6 + $0x78] sm:$0xf]
    %v139 = vld [vmem:[#allocation6 + $0x7c] sm:$0xf]
    %v140 = vld [vmem:[#allocation6 + $0x80] sm:$0xf]
    %v141 = vld [vmem:[#allocation6 + $0x84] sm:$0xf]
    %v142 = vld [vmem:[#allocation6 + $0x88] sm:$0xf]
    %v143 = vld [vmem:[#allocation6 + $0x8c] sm:$0xf]
    %v144 = vld [vmem:[#allocation6 + $0x90] sm:$0xf]
    %v145 = vld [vmem:[#allocation6 + $0x94] sm:$0xf]
    %v146 = vld [vmem:[#allocation6 + $0x98] sm:$0xf]
    %v147 = vld [vmem:[#allocation6 + $0x9c] sm:$0xf]
    %v148 = vld [vmem:[#allocation6 + $0xa0] sm:$0xf]
    %v149 = vld [vmem:[#allocation6 + $0xa4] sm:$0xf]
    %v150 = vld [vmem:[#allocation6 + $0xa8] sm:$0xf]
    %v151 = vld [vmem:[#allocation6 + $0xac] sm:$0xf]
    %v152 = vld [vmem:[#allocation6 + $0xb0] sm:$0xf]
    %v153 = vld [vmem:[#allocation6 + $0xb4] sm:$0xf]
    %v154 = vld [vmem:[#allocation6 + $0xb8] sm:$0xf]
    %v155 = vld [vmem:[#allocation6 + $0xbc] sm:$0xf]
    %v156 = vld [vmem:[#allocation6 + $0xc0] sm:$0xf]
    %v157 = vld [vmem:[#allocation6 + $0xc4] sm:$0xf]
    %v158 = vld [vmem:[#allocation6 + $0xc8] sm:$0xf]
    %v159 = vld [vmem:[#allocation6 + $0xcc] sm:$0xf]
    %v160 = vld [vmem:[#allocation6 + $0xd0] sm:$0xf]
    %v161 = vld [vmem:[#allocation6 + $0xd4] sm:$0xf]
    %v162 = vld [vmem:[#allocation6 + $0xd8] sm:$0xf]
    %v163 = vld [vmem:[#allocation6 + $0xdc] sm:$0xf]
    %v164 = vld [vmem:[#allocation6 + $0xe0] sm:$0xf]
    %v165 = vld [vmem:[#allocation6 + $0xe4] sm:$0xf]
    %v166 = vld [vmem:[#allocation6 + $0xe8] sm:$0xf]
    %v167 = vld [vmem:[#allocation6 + $0xec] sm:$0xf]
    %v168 = vld [vmem:[#allocation6 + $0xf0] sm:$0xf]
    %v169 = vld [vmem:[#allocation6 + $0xf4] sm:$0xf]
    %v170 = vld [vmem:[#allocation6 + $0xf8] sm:$0xf]
    %v171 = vld [vmem:[#allocation6 + $0xfc] sm:$0xf]
    %v172 = vld [vmem:[#allocation6 + $0x100] sm:$0xf]
    %v173 = vld [vmem:[#allocation6 + $0x104] sm:$0xf]
    %v174 = vld [vmem:[#allocation6 + $0x108] sm:$0xf]
    %v175 = vld [vmem:[#allocation6 + $0x10c] sm:$0xf]
    %v176 = vld [vmem:[#allocation6 + $0x110] sm:$0xf]
    %v177 = vld [vmem:[#allocation6 + $0x114] sm:$0xf]
    %v178 = vld [vmem:[#allocation6 + $0x118] sm:$0xf]
    %v179 = vld [vmem:[#allocation6 + $0x11c] sm:$0xf]
    %v180 = vld [vmem:[#allocation6 + $0x120] sm:$0xf]
    %v181 = vld [vmem:[#allocation6 + $0x124] sm:$0xf]
    %v182 = vld [vmem:[#allocation6 + $0x128] sm:$0xf]
    %v183 = vld [vmem:[#allocation6 + $0x12c] sm:$0xf]
    %v184 = vld [vmem:[#allocation6 + $0x130] sm:$0xf]
    %v185 = vld [vmem:[#allocation6 + $0x134] sm:$0xf]
    %v186 = vld [vmem:[#allocation6 + $0x138] sm:$0xf]
    %v187 = vld [vmem:[#allocation6 + $0x13c] sm:$0xf]
    %v188 = vld [vmem:[#allocation6 + $0x140] sm:$0xf]
    %v189 = vld [vmem:[#allocation6 + $0x144] sm:$0xf]
    %v190 = vld [vmem:[#allocation6 + $0x148] sm:$0xf]
    %v191 = vld [vmem:[#allocation6 + $0x14c] sm:$0xf]
    %v192 = vld [vmem:[#allocation6 + $0x150] sm:$0xf]
    %v193 = vld [vmem:[#allocation6 + $0x154] sm:$0xf]
    %v194 = vld [vmem:[#allocation6 + $0x158] sm:$0xf]
    %v195 = vld [vmem:[#allocation6 + $0x15c] sm:$0xf]
    %v196 = vld [vmem:[#allocation6 + $0x160] sm:$0xf]
    %v197 = vld [vmem:[#allocation6 + $0x164] sm:$0xf]
    %v198 = vld [vmem:[#allocation6 + $0x168] sm:$0xf]
    %v199 = vld [vmem:[#allocation6 + $0x16c] sm:$0xf]
    %v200 = vld [vmem:[#allocation6 + $0x170] sm:$0xf]
    %v201 = vld [vmem:[#allocation6 + $0x174] sm:$0xf]
    %v202 = vld [vmem:[#allocation6 + $0x178] sm:$0xf]
    %v203 = vld [vmem:[#allocation6 + $0x17c] sm:$0xf]
    %v204 = vld [vmem:[#allocation6 + $0x180] sm:$0xf]
    %v205 = vld [vmem:[#allocation6 + $0x184] sm:$0xf]
    %v206 = vld [vmem:[#allocation6 + $0x188] sm:$0xf]
    %v207 = vld [vmem:[#allocation6 + $0x18c] sm:$0xf]
    %v208 = vld [vmem:[#allocation6 + $0x190] sm:$0xf]
    %v209 = vld [vmem:[#allocation6 + $0x194] sm:$0xf]
    %v210 = vld [vmem:[#allocation6 + $0x198] sm:$0xf]
    %v211 = vld [vmem:[#allocation6 + $0x19c] sm:$0xf]
    %v212 = vld [vmem:[#allocation6 + $0x1a0] sm:$0xf]
    %v213 = vld [vmem:[#allocation6 + $0x1a4] sm:$0xf]
    %v214 = vld [vmem:[#allocation6 + $0x1a8] sm:$0xf]
    %v215 = vld [vmem:[#allocation6 + $0x1ac] sm:$0xf]
    %v216 = vld [vmem:[#allocation6 + $0x1b0] sm:$0xf]
    %v217 = vld [vmem:[#allocation6 + $0x1b4] sm:$0xf]
    %v218 = vld [vmem:[#allocation6 + $0x1b8] sm:$0xf]
    %v219 = vld [vmem:[#allocation6 + $0x1bc] sm:$0xf]
    %v220 = vld [vmem:[#allocation6 + $0x1c0] sm:$0xf]
    %v221 = vld [vmem:[#allocation6 + $0x1c4] sm:$0xf]
    %v222 = vld [vmem:[#allocation6 + $0x1c8] sm:$0xf]
    %v223 = vld [vmem:[#allocation6 + $0x1cc] sm:$0xf]
    %v224 = vld [vmem:[#allocation6 + $0x1d0] sm:$0xf]
    %v225 = vld [vmem:[#allocation6 + $0x1d4] sm:$0xf]
    %v226 = vld [vmem:[#allocation6 + $0x1d8] sm:$0xf]
    %v227 = vld [vmem:[#allocation6 + $0x1dc] sm:$0xf]
    %v228 = vld [vmem:[#allocation6 + $0x1e0] sm:$0xf]
    %v229 = vld [vmem:[#allocation6 + $0x1e4] sm:$0xf]
    %v230 = vld [vmem:[#allocation6 + $0x1e8] sm:$0xf]
    %v231 = vld [vmem:[#allocation6 + $0x1ec] sm:$0xf]
    %v232 = vld [vmem:[#allocation6 + $0x1f0] sm:$0xf]
    %v233 = vld [vmem:[#allocation6 + $0x1f4] sm:$0xf]
    %v234 = vld [vmem:[#allocation6 + $0x1f8] sm:$0xf]
    %v235 = vld [vmem:[#allocation6 + $0x1fc] sm:$0xf]
    %v364 = vunpack.c.l.b16 %v108
    %v365 = vunpack.c.l.b16 %v109
    %v366 = vunpack.c.l.b16 %v110
    %v367 = vunpack.c.l.b16 %v111
    %v368 = vunpack.c.l.b16 %v112
    %v369 = vunpack.c.l.b16 %v113
    %v370 = vunpack.c.l.b16 %v114
    %v371 = vunpack.c.l.b16 %v115
    %v372 = vunpack.c.l.b16 %v116
    %v373 = vunpack.c.l.b16 %v117
    %v374 = vunpack.c.l.b16 %v118
    %v375 = vunpack.c.l.b16 %v119
    %v376 = vunpack.c.l.b16 %v120
    %v377 = vunpack.c.l.b16 %v121
    %v378 = vunpack.c.l.b16 %v122
    %v379 = vunpack.c.l.b16 %v123
    %v380 = vunpack.c.l.b16 %v124
    %v381 = vunpack.c.l.b16 %v125
    %v382 = vunpack.c.l.b16 %v126
    %v383 = vunpack.c.l.b16 %v127
    %v384 = vunpack.c.l.b16 %v128
    %v385 = vunpack.c.l.b16 %v129
    %v386 = vunpack.c.l.b16 %v130
    %v387 = vunpack.c.l.b16 %v131
    %v388 = vunpack.c.l.b16 %v132
    %v389 = vunpack.c.l.b16 %v133
    %v390 = vunpack.c.l.b16 %v134
    %v391 = vunpack.c.l.b16 %v135
    %v392 = vunpack.c.l.b16 %v136
    %v393 = vunpack.c.l.b16 %v137
    %v394 = vunpack.c.l.b16 %v138
    %v395 = vunpack.c.l.b16 %v139
    %v396 = vunpack.c.l.b16 %v140
    %v397 = vunpack.c.l.b16 %v141
    %v398 = vunpack.c.l.b16 %v142
    %v399 = vunpack.c.l.b16 %v143
    %v400 = vunpack.c.l.b16 %v144
    %v401 = vunpack.c.l.b16 %v145
    %v402 = vunpack.c.l.b16 %v146
    %v403 = vunpack.c.l.b16 %v147
    %v404 = vunpack.c.l.b16 %v148
    %v405 = vunpack.c.l.b16 %v149
    %v406 = vunpack.c.l.b16 %v150
    %v407 = vunpack.c.l.b16 %v151
    %v408 = vunpack.c.l.b16 %v152
    %v409 = vunpack.c.l.b16 %v153
    %v410 = vunpack.c.l.b16 %v154
    %v411 = vunpack.c.l.b16 %v155
    %v412 = vunpack.c.l.b16 %v156
    %v413 = vunpack.c.l.b16 %v157
    %v414 = vunpack.c.l.b16 %v158
    %v415 = vunpack.c.l.b16 %v159
    %v416 = vunpack.c.l.b16 %v160
    %v417 = vunpack.c.l.b16 %v161
    %v418 = vunpack.c.l.b16 %v162
    %v419 = vunpack.c.l.b16 %v163
    %v420 = vunpack.c.l.b16 %v164
    %v421 = vunpack.c.l.b16 %v165
    %v422 = vunpack.c.l.b16 %v166
    %v423 = vunpack.c.l.b16 %v167
    %v424 = vunpack.c.l.b16 %v168
    %v425 = vunpack.c.l.b16 %v169
    %v426 = vunpack.c.l.b16 %v170
    %v427 = vunpack.c.l.b16 %v171
    %v428 = vunpack.c.l.b16 %v172
    %v429 = vunpack.c.l.b16 %v173
    %v430 = vunpack.c.l.b16 %v174
    %v431 = vunpack.c.l.b16 %v175
    %v432 = vunpack.c.l.b16 %v176
    %v433 = vunpack.c.l.b16 %v177
    %v434 = vunpack.c.l.b16 %v178
    %v435 = vunpack.c.l.b16 %v179
    %v436 = vunpack.c.l.b16 %v180
    %v437 = vunpack.c.l.b16 %v181
    %v438 = vunpack.c.l.b16 %v182
    %v439 = vunpack.c.l.b16 %v183
    %v440 = vunpack.c.l.b16 %v184
    %v441 = vunpack.c.l.b16 %v185
    %v442 = vunpack.c.l.b16 %v186
    %v443 = vunpack.c.l.b16 %v187
    %v444 = vunpack.c.l.b16 %v188
    %v445 = vunpack.c.l.b16 %v189
    %v446 = vunpack.c.l.b16 %v190
    %v447 = vunpack.c.l.b16 %v191
    %v448 = vunpack.c.l.b16 %v192
    %v449 = vunpack.c.l.b16 %v193
    %v450 = vunpack.c.l.b16 %v194
    %v451 = vunpack.c.l.b16 %v195
    %v452 = vunpack.c.l.b16 %v196
    %v453 = vunpack.c.l.b16 %v197
    %v454 = vunpack.c.l.b16 %v198
    %v455 = vunpack.c.l.b16 %v199
    %v456 = vunpack.c.l.b16 %v200
    %v457 = vunpack.c.l.b16 %v201
    %v458 = vunpack.c.l.b16 %v202
    %v459 = vunpack.c.l.b16 %v203
    %v460 = vunpack.c.l.b16 %v204
    %v461 = vunpack.c.l.b16 %v205
    %v462 = vunpack.c.l.b16 %v206
    %v463 = vunpack.c.l.b16 %v207
    %v464 = vunpack.c.l.b16 %v208
    %v465 = vunpack.c.l.b16 %v209
    %v466 = vunpack.c.l.b16 %v210
    %v467 = vunpack.c.l.b16 %v211
    %v468 = vunpack.c.l.b16 %v212
    %v469 = vunpack.c.l.b16 %v213
    %v470 = vunpack.c.l.b16 %v214
    %v471 = vunpack.c.l.b16 %v215
    %v472 = vunpack.c.l.b16 %v216
    %v473 = vunpack.c.l.b16 %v217
    %v474 = vunpack.c.l.b16 %v218
    %v475 = vunpack.c.l.b16 %v219
    %v476 = vunpack.c.l.b16 %v220
    %v477 = vunpack.c.l.b16 %v221
    %v478 = vunpack.c.l.b16 %v222
    %v479 = vunpack.c.l.b16 %v223
    %v480 = vunpack.c.l.b16 %v224
    %v481 = vunpack.c.l.b16 %v225
    %v482 = vunpack.c.l.b16 %v226
    %v483 = vunpack.c.l.b16 %v227
    %v484 = vunpack.c.l.b16 %v228
    %v485 = vunpack.c.l.b16 %v229
    %v486 = vunpack.c.l.b16 %v230
    %v487 = vunpack.c.l.b16 %v231
    %v488 = vunpack.c.l.b16 %v232
    %v489 = vunpack.c.l.b16 %v233
    %v490 = vunpack.c.l.b16 %v234
    %v491 = vunpack.c.l.b16 %v235
    %v492 = vpack.c.b16 %v365, %v364
    %v493 = vpack.c.b16 %v367, %v366
    %v494 = vpack.c.b16 %v369, %v368
    %v495 = vpack.c.b16 %v371, %v370
    %v496 = vpack.c.b16 %v373, %v372
    %v497 = vpack.c.b16 %v375, %v374
    %v498 = vpack.c.b16 %v377, %v376
    %v499 = vpack.c.b16 %v379, %v378
    %v500 = vpack.c.b16 %v381, %v380
    %v501 = vpack.c.b16 %v383, %v382
    %v502 = vpack.c.b16 %v385, %v384
    %v503 = vpack.c.b16 %v387, %v386
    %v504 = vpack.c.b16 %v389, %v388
    %v505 = vpack.c.b16 %v391, %v390
    %v506 = vpack.c.b16 %v393, %v392
    %v507 = vpack.c.b16 %v395, %v394
    %v508 = vpack.c.b16 %v397, %v396
    %v509 = vpack.c.b16 %v399, %v398
    %v510 = vpack.c.b16 %v401, %v400
    %v511 = vpack.c.b16 %v403, %v402
    %v512 = vpack.c.b16 %v405, %v404
    %v513 = vpack.c.b16 %v407, %v406
    %v514 = vpack.c.b16 %v409, %v408
    %v515 = vpack.c.b16 %v411, %v410
    %v516 = vpack.c.b16 %v413, %v412
    %v517 = vpack.c.b16 %v415, %v414
    %v518 = vpack.c.b16 %v417, %v416
    %v519 = vpack.c.b16 %v419, %v418
    %v520 = vpack.c.b16 %v421, %v420
    %v521 = vpack.c.b16 %v423, %v422
    %v522 = vpack.c.b16 %v425, %v424
    %v523 = vpack.c.b16 %v427, %v426
    %v524 = vpack.c.b16 %v429, %v428
    %v525 = vpack.c.b16 %v431, %v430
    %v526 = vpack.c.b16 %v433, %v432
    %v527 = vpack.c.b16 %v435, %v434
    %v528 = vpack.c.b16 %v437, %v436
    %v529 = vpack.c.b16 %v439, %v438
    %v530 = vpack.c.b16 %v441, %v440
    %v531 = vpack.c.b16 %v443, %v442
    %v532 = vpack.c.b16 %v445, %v444
    %v533 = vpack.c.b16 %v447, %v446
    %v534 = vpack.c.b16 %v449, %v448
    %v535 = vpack.c.b16 %v451, %v450
    %v536 = vpack.c.b16 %v453, %v452
    %v537 = vpack.c.b16 %v455, %v454
    %v538 = vpack.c.b16 %v457, %v456
    %v539 = vpack.c.b16 %v459, %v458
    %v540 = vpack.c.b16 %v461, %v460
    %v541 = vpack.c.b16 %v463, %v462
    %v542 = vpack.c.b16 %v465, %v464
    %v543 = vpack.c.b16 %v467, %v466
    %v544 = vpack.c.b16 %v469, %v468
    %v545 = vpack.c.b16 %v471, %v470
    %v546 = vpack.c.b16 %v473, %v472
    %v547 = vpack.c.b16 %v475, %v474
    %v548 = vpack.c.b16 %v477, %v476
    %v549 = vpack.c.b16 %v479, %v478
    %v550 = vpack.c.b16 %v481, %v480
    %v551 = vpack.c.b16 %v483, %v482
    %v552 = vpack.c.b16 %v485, %v484
    %v553 = vpack.c.b16 %v487, %v486
    %v554 = vpack.c.b16 %v489, %v488
    %v555 = vpack.c.b16 %v491, %v490
    %620 = vmatpush.bf16.msra.mxu0 %v499
    %621 = vmatpush.bf16.msra.mxu0 %v498
    %622 = vmatpush.bf16.msra.mxu0 %v497
    %623 = vmatpush.bf16.msra.mxu0 %v496
    %624 = vmatpush.bf16.msra.mxu0 %v495
    %625 = vmatpush.bf16.msra.mxu0 %v494
    %626 = vmatpush.bf16.msra.mxu0 %v493
    %627 = vmatpush.bf16.msra.mxu0 %v492
    %628 = vmatmul.bf16.gmra.mxu0 %v99
    %v629 = vpop.f32.mrf.mxu0
    %v630 = vadd.f32 0.0, %v629
    %v631 = vpop.f32.mrf.mxu0
    %632 = vdwg.mxu0
    %633 = vmatpush.bf16.msra.mxu0 %v507
    %634 = vmatpush.bf16.msra.mxu0 %v506
    %635 = vmatpush.bf16.msra.mxu0 %v505
    %636 = vmatpush.bf16.msra.mxu0 %v504
    %637 = vmatpush.bf16.msra.mxu0 %v503
    %638 = vmatpush.bf16.msra.mxu0 %v502
    %639 = vmatpush.bf16.msra.mxu0 %v501
    %640 = vmatpush.bf16.msra.mxu0 %v500
    %641 = vmatmul.bf16.gmra.mxu0 %v100
    %v642 = vpop.f32.mrf.mxu0
    %v643 = vadd.f32 %v630, %v642
    %v644 = vpop.f32.mrf.mxu0
    %645 = vdwg.mxu0
    %646 = vmatpush.bf16.msra.mxu0 %v515
    %647 = vmatpush.bf16.msra.mxu0 %v514
    %648 = vmatpush.bf16.msra.mxu0 %v513
    %649 = vmatpush.bf16.msra.mxu0 %v512
    %650 = vmatpush.bf16.msra.mxu0 %v511
    %651 = vmatpush.bf16.msra.mxu0 %v510
    %652 = vmatpush.bf16.msra.mxu0 %v509
    %653 = vmatpush.bf16.msra.mxu0 %v508
    %654 = vmatmul.bf16.gmra.mxu0 %v101
    %v655 = vpop.f32.mrf.mxu0
    %v656 = vadd.f32 %v643, %v655
    %v657 = vpop.f32.mrf.mxu0
    %658 = vdwg.mxu0
    %659 = vmatpush.bf16.msra.mxu0 %v523
    %660 = vmatpush.bf16.msra.mxu0 %v522
    %661 = vmatpush.bf16.msra.mxu0 %v521
    %662 = vmatpush.bf16.msra.mxu0 %v520
    %663 = vmatpush.bf16.msra.mxu0 %v519
    %664 = vmatpush.bf16.msra.mxu0 %v518
    %665 = vmatpush.bf16.msra.mxu0 %v517
    %666 = vmatpush.bf16.msra.mxu0 %v516
    %667 = vmatmul.bf16.gmra.mxu0 %v102
    %v668 = vpop.f32.mrf.mxu0
    %v669 = vadd.f32 %v656, %v668
    %v670 = vpop.f32.mrf.mxu0
    %671 = vdwg.mxu0
    %672 = vmatpush.bf16.msra.mxu0 %v531
    %673 = vmatpush.bf16.msra.mxu0 %v530
    %674 = vmatpush.bf16.msra.mxu0 %v529
    %675 = vmatpush.bf16.msra.mxu0 %v528
    %676 = vmatpush.bf16.msra.mxu0 %v527
    %677 = vmatpush.bf16.msra.mxu0 %v526
    %678 = vmatpush.bf16.msra.mxu0 %v525
    %679 = vmatpush.bf16.msra.mxu0 %v524
    %680 = vmatmul.bf16.gmra.mxu0 %v103
    %v681 = vpop.f32.mrf.mxu0
    %v682 = vadd.f32 %v669, %v681
    %v683 = vpop.f32.mrf.mxu0
    %684 = vdwg.mxu0
    %685 = vmatpush.bf16.msra.mxu0 %v539
    %686 = vmatpush.bf16.msra.mxu0 %v538
    %687 = vmatpush.bf16.msra.mxu0 %v537
    %688 = vmatpush.bf16.msra.mxu0 %v536
    %689 = vmatpush.bf16.msra.mxu0 %v535
    %690 = vmatpush.bf16.msra.mxu0 %v534
    %691 = vmatpush.bf16.msra.mxu0 %v533
    %692 = vmatpush.bf16.msra.mxu0 %v532
    %693 = vmatmul.bf16.gmra.mxu0 %v104
    %v694 = vpop.f32.mrf.mxu0
    %v695 = vadd.f32 %v682, %v694
    %v696 = vpop.f32.mrf.mxu0
    %697 = vdwg.mxu0
    %698 = vmatpush.bf16.msra.mxu0 %v547
    %699 = vmatpush.bf16.msra.mxu0 %v546
    %700 = vmatpush.bf16.msra.mxu0 %v545
    %701 = vmatpush.bf16.msra.mxu0 %v544
    %702 = vmatpush.bf16.msra.mxu0 %v543
    %703 = vmatpush.bf16.msra.mxu0 %v542
    %704 = vmatpush.bf16.msra.mxu0 %v541
    %705 = vmatpush.bf16.msra.mxu0 %v540
    %706 = vmatmul.bf16.gmra.mxu0 %v105
    %v707 = vpop.f32.mrf.mxu0
    %v708 = vadd.f32 %v695, %v707
    %v709 = vpop.f32.mrf.mxu0
    %710 = vdwg.mxu0
    %711 = vmatpush.bf16.msra.mxu0 %v555
    %712 = vmatpush.bf16.msra.mxu0 %v554
    %713 = vmatpush.bf16.msra.mxu0 %v553
    %714 = vmatpush.bf16.msra.mxu0 %v552
    %715 = vmatpush.bf16.msra.mxu0 %v551
    %716 = vmatpush.bf16.msra.mxu0 %v550
    %717 = vmatpush.bf16.msra.mxu0 %v549
    %718 = vmatpush.bf16.msra.mxu0 %v548
    %719 = vmatmul.bf16.gmra.mxu0 %v106
    %v720 = vpop.f32.mrf.mxu0
    %v721 = vadd.f32 %v708, %v720
    %v722 = vpop.f32.mrf.mxu0
    %723 = vdwg.mxu0
    %v724 = vadd.f32 %v107, %v721
    %725 = vst [vmem:[#allocation2] sm:$0xff] %v724
    // Predicated region
    $region26: #{tpu_custom_call.1} parent=1 // pred_check
      %p726 = pneg %p47
    $region27: #{tpu_custom_call.1} parent=1 // pred_check_branch
      %728 = sbr.rel (%p726) target = $region29
    $region28: #{tpu_custom_call.1} parent=1 // pred_region
      %v729 = vld [vmem:[#allocation2] sm:$0xff]
      %v730 = vld [vmem:[%s2] sm:$0x1]
      %v732 = vperm.slane %v730, 0
      %v734 = vadd.f32 %v729, %v732
      %735 = vmax.xlane.f32.xlu0 %v734
      %v736 = vpop.xlane.xlu0 %735
      %v737 = vsub.f32 %v734, %v736
      %v738 = vmul.f32 %v737, 1.442695
      %v739 = vpow.pop %v738
      %740 = vadd.xlane.f32.xlu0 %v739
      %v741 = vpop.xlane.xlu0 %740
      %v742 = vrcp.pop %v741
      %v743 = vmul.f32 %v741, %v742
      %v744 = vsub.f32 1.0, %v743
      %v745 = vmul.f32 %v742, %v744
      %v746 = vadd.f32 %v742, %v745
      %vm747 = vweird.f32 %v741
      %vm748 = vweird.f32 %v742
      %vm749 = vmor %vm747, %vm748
      %v750 = vsel %vm749, %v742, %v746
      %v751 = vand.u32 2147483647, %v741
      %vm752 = vcmp.eq.f32.partialorder %v751, 8.507059e+37
      %v753 = vand.u32 %v741, 2147483648
      %v754 = vor.u32 1.1754944e-38, %v753
      %v755 = vsel %vm752, %v754, %v750
      %v756 = vmul.f32 %v739, %v755
      %vm757 = vcmask 80896
      %758 = vst.msk [vmem:[#allocation8] sm:$0xff] %vm757, %v756
    $region29: #{tpu_custom_call.1} parent=1 // pred_fallthru
      _
    // Predicated region
    $region30: #{tpu_custom_call.1} parent=1 // pred_check
      _
    $region31: #{tpu_custom_call.1} parent=1 // pred_check_branch
      %760 = sbr.rel (0) target = $region33
    $region32: #{tpu_custom_call.1} parent=1 // pred_region
      %762 = vsyncadd [#allocation5], 96
      %s763 = sshll.u32 [#allocation8], 4
      %s764 = int_to_ptr.vmem [resolvable:$true] %s763
      %s765 = sshll.u32 %s3, 4
      %s766 = int_to_ptr.hbm [resolvable:$true] %s765
      %771 = dma.vmem_to_hbm [thread:$0]  %s764, 32, %s766, [#allocation5], 32, 32, 2
    $region33: #{tpu_custom_call.1} parent=1 // pred_fallthru
      _
    // Predicated region
    $region34: #{tpu_custom_call.1} parent=1 // pred_check
      _
    $region35: #{tpu_custom_call.1} parent=1 // pred_check_branch
      %773 = sbr.rel (0) target = $region37
    $region36: #{tpu_custom_call.1} parent=1 // pred_region
      %775 = dma.done [#allocation5], 128
    $region37: #{tpu_custom_call.1} parent=1 // pred_fallthru
      _
    %776 = vsyncpa [#allocation4], 1
    %777 = vsyncpa [#allocation7], 1
    %778 = vsyncpa [#allocation5], 1

</llo_original>
